<compile_context>
chip_gen: v6e
topology: v6e:2x2x1
jax: 0.10.0
libtpu: 0.0.40
codegen_flags: <defaults>
</compile_context>

<pallas_src>
import functools

import jax
import jax.numpy as jnp
from jax.experimental import pallas as pl
from jax.experimental.pallas import tpu as pltpu

IN_FEATURES = 512
OUT_FEATURES = 2


def _round_up(x: int, m: int) -> int:
    return ((x + m - 1) // m) * m


def _device_kind() -> str:
    try:
        return jax.devices()[0].device_kind.lower()
    except Exception:
        return ""


def _default_tile_rows(x_dtype) -> int:
    """Generation-aware batch tile (rows/step), targeting ~8 MiB per x tile
    (4 MiB on v5e, where HBM BW is lower and step overhead already small)."""
    kind = _device_kind()
    if "v5" in kind:
        base = 2048          # 4 MiB f32/step; >2048 buys <5% at ~820 GB/s
    else:                    # v6e / v7x / unknown
        base = 4096          # 8 MiB f32/step
    itemsize = jnp.dtype(x_dtype).itemsize
    if itemsize < 4:         # bf16/int8: keep bytes/step constant -> more rows
        base *= 4 // itemsize
    return base


def _make_classifier_kernel(norm_flag: bool):
    """Build a kernel specialized on the (static, trace-time) norm_flag."""

    def kernel(w_ref, x_ref, o_ref):
        # w_ref: VMEM (2, 512)   x_ref: VMEM (tb, 512)   o_ref: VMEM (tb, 2)
        x = x_ref[...]                                   # native dtype (f32/bf16)
        w = w_ref[...]
        if norm_flag:
            # Per-input-feature column norm (axis=0), matching
            # l2_norm(weight, axis=0) in the PyTorch module. No eps, exactly
            # like the reference torch.div (an all-zero column would NaN in
            # both). (2,512) of VPU/EUP work per step -> free filler under an
            # HBM-bound kernel, and stays correct under megacore sharding.
            wf = w.astype(jnp.float32)
            inv_norm = jax.lax.rsqrt(jnp.sum(wf * wf, axis=0, keepdims=True))
            w = (wf * inv_norm).astype(x.dtype)
        elif w.dtype != x.dtype:
            w = w.astype(x.dtype)

        # out = x @ w.T : contract over the 512-feature axis on the MXU.
        out = jax.lax.dot_general(
            x, w,
            dimension_numbers=(((1,), (1,)), ((), ())),
            preferred_element_type=jnp.float32,
        )                                                # (tb, 2) f32
        o_ref[...] = out.astype(o_ref.dtype)

    return kernel


@functools.partial(jax.jit, static_argnames=("norm_flag", "tile_b", "out_dtype"))
def classifier_forward(x, weight, norm_flag: bool, tile_b: int | None = None,
                       out_dtype=None):
    """x: (B, 512), weight: (2, 512), norm_flag: static python bool.

    out_dtype: optional output dtype (defaults to x.dtype); useful when feeding
    bf16 activations but wanting f32 logits.
    """
    B, F = x.shape
    assert F == IN_FEATURES and weight.shape == (OUT_FEATURES, IN_FEATURES)
    out_dtype = jnp.dtype(x.dtype) if out_dtype is None else jnp.dtype(out_dtype)

    x_itemsize = jnp.dtype(x.dtype).itemsize
    # (8,128) f32 / (16,128) bf16 / (32,128) int8 sublane packing.
    row_align = max(8, 32 // x_itemsize)

    tb_cap = int(tile_b) if tile_b is not None else _default_tile_rows(x.dtype)
    two_cores = "v7" in _device_kind()   # v7x: 2 TensorCores per chip

    if B <= tb_cap:
        if two_cores and B > 2 * row_align:
            # Guarantee >= 2 grid steps so the "parallel" axis actually shards
            # the batch across both TensorCores instead of one TC streaming all of x.
            tb = _round_up(pl.cdiv(B, 2), row_align)
        else:
            tb = B                       # full-extent block; no alignment needed
    else:
        tb = max(row_align, (tb_cap // row_align) * row_align)
    grid = (pl.cdiv(B, tb),)

    # Scoped-VMEM budget from the actual tile sizes (double-buffered inputs/outputs),
    # with headroom; keeps big tiles compiling on v5e (16 MiB default) and
    # v7x (32 MiB default / 64 MiB physical).
    w_bytes = OUT_FEATURES * IN_FEATURES * jnp.dtype(weight.dtype).itemsize
    x_tile_bytes = tb * IN_FEATURES * x_itemsize
    o_tile_bytes = tb * OUT_FEATURES * out_dtype.itemsize
    needed = 2 * (x_tile_bytes + o_tile_bytes) + 2 * w_bytes
    vmem_limit = int(min(max(needed + (4 << 20), 16 << 20), 48 << 20))

    cost = pl.CostEstimate(
        flops=2 * B * IN_FEATURES * OUT_FEATURES,
        transcendentals=(IN_FEATURES if norm_flag else 0),
        bytes_accessed=(B * IN_FEATURES * x_itemsize
                        + w_bytes
                        + B * OUT_FEATURES * out_dtype.itemsize),
    )

    kernel = _make_classifier_kernel(bool(norm_flag))
    return pl.pallas_call(
        kernel,
        out_shape=jax.ShapeDtypeStruct((B, OUT_FEATURES), out_dtype),
        grid=grid,
        in_specs=[
            pl.BlockSpec((OUT_FEATURES, IN_FEATURES), lambda i: (0, 0)),  # weight (resident)
            pl.BlockSpec((tb, IN_FEATURES), lambda i: (i, 0)),            # x tile (pipelined)
        ],
        out_specs=pl.BlockSpec((tb, OUT_FEATURES), lambda i: (i, 0)),
        compiler_params=pltpu.CompilerParams(
            dimension_semantics=("parallel",),   # shard batch tiles across TCs (v7x)
            vmem_limit_bytes=vmem_limit,
        ),
        cost_estimate=cost,
    )(weight, x)


def _reference_forward(x, weight, norm_flag: bool):
    w = weight
    if norm_flag:
        w = w / jnp.linalg.norm(w, ord=2, axis=0, keepdims=True)
    return x.astype(jnp.float32) @ w.astype(jnp.float32).T


if __name__ == "__main__":
    key = jax.random.PRNGKey(0)
    k_w, k_x = jax.random.split(key)

    # Deterministic init matching nn.Linear(512, 2, bias=False) + normal_(0, 0.01)
    weight = 0.01 * jax.random.normal(
        k_w, (OUT_FEATURES, IN_FEATURES), dtype=jnp.float32)

    ok = True

    # f32 cases: single full block, multi-block grid, ragged last block,
    # and the generation-aware default tile.
    for B, tb in ((8, None), (16, 8), (20, 8), (64, None)):
        x = jax.random.normal(
            jax.random.fold_in(k_x, B), (B, IN_FEATURES), dtype=jnp.float32)
        for norm_flag in (True, False):
            out = jax.block_until_ready(
                classifier_forward(x, weight, norm_flag, tile_b=tb))
            ref = _reference_forward(x, weight, norm_flag)
            if out.shape != ref.shape or not jnp.allclose(out, ref, atol=1e-4, rtol=1e-4):
                ok = False
                print(f"MISMATCH f32 B={B} tile_b={tb} norm_flag={norm_flag}: "
                      f"max_err={float(jnp.max(jnp.abs(out - ref)))}")

    # bf16 activation case (half the HBM bytes): f32 logits requested.
    B, tb = 32, 16
    x_bf = jax.random.normal(
        jax.random.fold_in(k_x, 1000 + B), (B, IN_FEATURES),
        dtype=jnp.float32).astype(jnp.bfloat16)
    for norm_flag in (True, False):
        out = jax.block_until_ready(
            classifier_forward(x_bf, weight, norm_flag, tile_b=tb,
                               out_dtype=jnp.float32))
        # Reference mirrors the kernel's precision: bf16-rounded (normalized)
        # weight, f32 accumulation.
        w_ref = weight
        if norm_flag:
            w_ref = w_ref / jnp.linalg.norm(w_ref, ord=2, axis=0, keepdims=True)
        w_ref = w_ref.astype(jnp.bfloat16)
        ref = x_bf.astype(jnp.float32) @ w_ref.astype(jnp.float32).T
        if out.shape != ref.shape or not jnp.allclose(out, ref, atol=2e-2, rtol=2e-2):
            ok = False
            print(f"MISMATCH bf16 B={B} tile_b={tb} norm_flag={norm_flag}: "
                  f"max_err={float(jnp.max(jnp.abs(out - ref)))}")

    if ok:
        print("KERNEL_OK")
</pallas_src>

<mosaic_0001>
module attributes {stable_mosaic.version = 11 : i64} {
  func.func @kernel(%arg0: i32, %arg1: memref<2x512xf32, #tpu.memory_space<vmem>>, %arg2: memref<8x512xf32, #tpu.memory_space<vmem>>, %arg3: memref<8x2xf32, #tpu.memory_space<vmem>>) attributes {dimension_semantics = [#tpu.dimension_semantics<parallel>], iteration_bounds = array<i64: 1>, scalar_prefetch = 0 : i64, scratch_operands = 0 : i64, tpu.core_type = #tpu.core_type<tc>, window_params = [{pipeline_mode = #tpu.pipeline_mode<synchronous>, transform_indices = @transform_0, window_bounds = array<i64: 2, 512>}, {transform_indices = @transform_1, window_bounds = array<i64: 8, 512>}, {transform_indices = @transform_2, window_bounds = array<i64: 8, 2>}]} {
    %c0 = arith.constant 0 : index
    %c0_0 = arith.constant 0 : index
    %0 = vector.load %arg2[%c0, %c0_0] : memref<8x512xf32, #tpu.memory_space<vmem>>, vector<8x512xf32>
    %c0_1 = arith.constant 0 : index
    %c0_2 = arith.constant 0 : index
    %1 = vector.load %arg1[%c0_1, %c0_2] : memref<2x512xf32, #tpu.memory_space<vmem>>, vector<2x512xf32>
    %2 = arith.mulf %1, %1 : vector<2x512xf32>
    %cst = arith.constant dense<0.000000e+00> : vector<512xf32>
    %3 = vector.multi_reduction <add>, %2, %cst [0] : vector<2x512xf32> to vector<512xf32>
    %4 = vector.shape_cast %3 : vector<512xf32> to vector<1x512xf32>
    %5 = math.rsqrt %4 : vector<1x512xf32>
    %6 = vector.broadcast %5 : vector<1x512xf32> to vector<2x512xf32>
    %7 = arith.mulf %1, %6 : vector<2x512xf32>
    %cst_3 = arith.constant dense<0.000000e+00> : vector<8x2xf32>
    %8 = tpu.matmul %0, %7, %cst_3 {dimension_numbers = #tpu.dot_dimension_numbers<[1], [1], [0], [0], [0, 0, 1, 0], [], []>} : vector<8x512xf32>, vector<2x512xf32>, vector<8x2xf32> -> vector<8x2xf32>
    %c0_4 = arith.constant 0 : index
    %c0_5 = arith.constant 0 : index
    %9 = vector.load %arg3[%c0_4, %c0_5] : memref<8x2xf32, #tpu.memory_space<vmem>>, vector<8x2xf32>
    tpu.vector_store %arg3[%c0_4, %c0_5], %8 {strides = array<i32>} : memref<8x2xf32, #tpu.memory_space<vmem>>, vector<8x2xf32>,
    return
  }
  func.func @transform_0(%arg0: i32) -> (i32, i32) {
    %c0_i32 = arith.constant 0 : i32
    %c0_i32_0 = arith.constant 0 : i32
    %c0_i32_1 = arith.constant 0 : i32
    return %c0_i32, %c0_i32_0 : i32, i32
  }
  func.func @transform_1(%arg0: i32) -> (i32, i32) {
    %c0_i32 = arith.constant 0 : i32
    %c0_i32_0 = arith.constant 0 : i32
    return %arg0, %c0_i32 : i32, i32
  }
  func.func @transform_2(%arg0: i32) -> (i32, i32) {
    %c0_i32 = arith.constant 0 : i32
    %c0_i32_0 = arith.constant 0 : i32
    return %arg0, %c0_i32 : i32, i32
  }
}

</mosaic_0001>

<llo_original>
// kernel: classifier_forward.1
$region0: #{classifier_forward.1}
  #allocation0 [shape = 'u32[]', space=smem, size = 0x4, offset = 0x4, fixed_abs, tag = 'smem constant byte address 0x4 - core index']
  #allocation1 [shape = 'u32[144,128]{1,0:T(1,128)}', space=vmem, size = 0x12000, scoped, tag = 'internal scratch']
  %s0 = inlined_call_operand.hbm [shape: f32[2,512], index: 0, kind: input, shape index: {}]
  %s1 = inlined_call_operand.hbm [shape: f32[8,512], index: 1, kind: input, shape index: {}]
  %s2 = inlined_call_operand.vmem [shape: f32[8,2], index: 2, kind: output, shape index: {}]
  %s3 = sld [smem:[#allocation0]]
  $region26: #{classifier_forward.1} parent=0
    _
  %s5 = ssub.s32 1, %s3
  %s6 = scalar_select 0, %s5, %s3
  $region1: #{classifier_forward.1} parent=0
    #allocation2 [shape = 'u8[4096]{0}', space=vmem, size = 0x1000, scoped, tag = 'input window, operand 0, single buffered']
    #allocation3 [shape = 's32[1]{0}', space=sflag, size = 0x4, scoped, tag = 'scoped memory for classifier_forward.1']
    #allocation4 [shape = 'u8[16384]{0}', space=vmem, size = 0x4000, scoped, tag = 'input window, operand 1, single buffered']
    #allocation5 [shape = 's32[1]{0}', space=sflag, size = 0x4, scoped, tag = 'scoped memory for classifier_forward.1']
    %7 = vsyncpa [#allocation3], 0
    %8 = vsyncpa [#allocation5], 0
    // Predicated region
    $region2: #{classifier_forward.1} parent=1 // pred_check
      _
    $region3: #{classifier_forward.1} parent=1 // pred_check_branch
      %10 = sbr.rel (0) target = $region5
    $region4: #{classifier_forward.1} parent=1 // pred_region
      %s12 = ssub.s32 128, 128
      %13 = vsyncadd [#allocation3], %s12
      %s15 = sshll.u32 [#allocation2], 4
      %s16 = int_to_ptr.vmem [resolvable:$true] %s15
      %18 = dma.hbm_to_vmem [thread:$0]  %s0, 128, %s16, [#allocation3]
    $region5: #{classifier_forward.1} parent=1 // pred_fallthru
      _
    // Predicated region
    $region6: #{classifier_forward.1} parent=1 // pred_check
      _
    $region7: #{classifier_forward.1} parent=1 // pred_check_branch
      %20 = sbr.rel (0) target = $region9
    $region8: #{classifier_forward.1} parent=1 // pred_region
      %s22 = ssub.s32 512, 512
      %23 = vsyncadd [#allocation5], %s22
      %s25 = sshll.u32 [#allocation4], 4
      %s26 = int_to_ptr.vmem [resolvable:$true] %s25
      %28 = dma.hbm_to_vmem [thread:$0]  %s1, 512, %s26, [#allocation5]
    $region9: #{classifier_forward.1} parent=1 // pred_fallthru
      _
    // Predicated region
    $region10: #{classifier_forward.1} parent=1 // pred_check
      _
    $region11: #{classifier_forward.1} parent=1 // pred_check_branch
      %30 = sbr.rel (0) target = $region13
    $region12: #{classifier_forward.1} parent=1 // pred_region
      %31 = dma.done [#allocation3], 128
    $region13: #{classifier_forward.1} parent=1 // pred_fallthru
      _
    // Predicated region
    $region14: #{classifier_forward.1} parent=1 // pred_check
      _
    $region15: #{classifier_forward.1} parent=1 // pred_check_branch
      %33 = sbr.rel (0) target = $region17
    $region16: #{classifier_forward.1} parent=1 // pred_region
      %34 = dma.done [#allocation5], 512
    $region17: #{classifier_forward.1} parent=1 // pred_fallthru
      _
    %v35 = vld [vmem:[#allocation4] sm:$0xff]
    %v36 = vld [vmem:[#allocation4 + $0x8] sm:$0xff]
    %v37 = vld [vmem:[#allocation4 + $0x10] sm:$0xff]
    %v38 = vld [vmem:[#allocation4 + $0x18] sm:$0xff]
    %v39 = vld [vmem:[#allocation2] sm:$0xff]
    %v40 = vmul.f32 %v39, %v39
    %v42 = vcombine.high %v40, %v40
    %v44 = vunpack.c.l.s4 1983009808
    %v45 = vunpack.c.0.s8 %v44
    %v46 = vlaneseq
    %v47 = vshrl.u32 %v46, 7
    %v48 = vsub.s32 %v45, %v47
    %v49 = vrot.slane %v40, %v48
    %v51 = vunpack.c.l.s4 1983009808
    %v52 = vunpack.c.0.s8 %v51
    %v53 = vlaneseq
    %v54 = vshrl.u32 %v53, 7
    %v55 = vsub.s32 %v52, %v54
    %v56 = vrot.slane %v42, %v55
    %v57 = vcombine.high %v49, %v49
    %v58 = vcombine.high %v56, %v56
    %vm63 = vcmask 1041408
    %v64 = vsel %vm63, %v49, 0.0
    %v65 = vrot.slane %v64, 4
    %v66 = vadd.f32 %v64, %v65
    %v67 = vrot.slane %v66, 2
    %v68 = vadd.f32 %v66, %v67
    %v69 = vrot.slane %v68, 1
    %v70 = vadd.f32 %v68, %v69
    %v71 = vsel %vm63, %v57, 0.0
    %v72 = vrot.slane %v71, 4
    %v73 = vadd.f32 %v71, %v72
    %v74 = vrot.slane %v73, 2
    %v75 = vadd.f32 %v73, %v74
    %v76 = vrot.slane %v75, 1
    %v77 = vadd.f32 %v75, %v76
    %v78 = vsel %vm63, %v56, 0.0
    %v79 = vrot.slane %v78, 4
    %v80 = vadd.f32 %v78, %v79
    %v81 = vrot.slane %v80, 2
    %v82 = vadd.f32 %v80, %v81
    %v83 = vrot.slane %v82, 1
    %v84 = vadd.f32 %v82, %v83
    %v85 = vsel %vm63, %v58, 0.0
    %v86 = vrot.slane %v85, 4
    %v87 = vadd.f32 %v85, %v86
    %v88 = vrot.slane %v87, 2
    %v89 = vadd.f32 %v87, %v88
    %v90 = vrot.slane %v89, 1
    %v91 = vadd.f32 %v89, %v90
    %v92 = vrsqrt.pop %v70
    %v93 = vrsqrt.pop %v77
    %v94 = vrsqrt.pop %v84
    %v95 = vrsqrt.pop %v91
    %v100 = vcombine.low %v92, %v93
    %v101 = vcombine.low %v94, %v95
    %v103 = vunpack.c.l.s4 1983009808
    %v104 = vunpack.c.0.s8 %v103
    %v105 = vlaneseq
    %v106 = vshrl.u32 %v105, 7
    %v107 = vsub.s32 %v104, %v106
    %v108 = vrot.slane %v100, %v107
    %v110 = vunpack.c.l.s4 1983009808
    %v111 = vunpack.c.0.s8 %v110
    %v112 = vlaneseq
    %v113 = vshrl.u32 %v112, 7
    %v114 = vsub.s32 %v111, %v113
    %v115 = vrot.slane %v101, %v114
    %v116 = vcombine.low %v108, %v115
    %v118 = vmul.f32 %v39, %v116
    %v120 = vcombine.high %v118, %v118
    %v122 = vunpack.c.l.s4 1983009808
    %v123 = vunpack.c.0.s8 %v122
    %v124 = vlaneseq
    %v125 = vshrl.u32 %v124, 7
    %v126 = vsub.s32 %v123, %v125
    %v127 = vrot.slane %v118, %v126
    %v129 = vunpack.c.l.s4 1983009808
    %v130 = vunpack.c.0.s8 %v129
    %v131 = vlaneseq
    %v132 = vshrl.u32 %v131, 7
    %v133 = vsub.s32 %v130, %v132
    %v134 = vrot.slane %v120, %v133
    %v135 = vcombine.high %v127, %v127
    %v136 = vcombine.high %v134, %v134
    %141 = vmatprep.subr.mxu0 0.0
    %142 = vmatpush1.xpose.msra.mxu0 0.0
    %143 = vmatprep.subr.mxu0 0.0
    %144 = vmatpush1.xpose.msra.mxu0 0.0
    %145 = vmatprep.subr.mxu0 0.0
    %146 = vmatpush1.xpose.msra.mxu0 0.0
    %147 = vmatprep.subr.mxu0 0.0
    %148 = vmatpush1.xpose.msra.mxu0 0.0
    %149 = vmatprep.subr.mxu0 0.0
    %150 = vmatpush1.xpose.msra.mxu0 0.0
    %151 = vmatprep.subr.mxu0 0.0
    %152 = vmatpush1.xpose.msra.mxu0 0.0
    %153 = vmatprep.subr.mxu0 0.0
    %154 = vmatpush1.xpose.msra.mxu0 0.0
    %155 = vmatprep.subr.mxu0 0.0
    %156 = vmatpush1.xpose.msra.mxu0 0.0
    %157 = vmatprep.subr.mxu0 0.0
    %158 = vmatpush1.xpose.msra.mxu0 0.0
    %159 = vmatprep.subr.mxu0 0.0
    %160 = vmatpush1.xpose.msra.mxu0 0.0
    %161 = vmatprep.subr.mxu0 0.0
    %162 = vmatpush1.xpose.msra.mxu0 0.0
    %163 = vmatprep.subr.mxu0 0.0
    %164 = vmatpush1.xpose.msra.mxu0 0.0
    %165 = vmatprep.subr.mxu0 0.0
    %166 = vmatpush1.xpose.msra.mxu0 0.0
    %167 = vmatprep.subr.mxu0 0.0
    %168 = vmatpush1.xpose.msra.mxu0 0.0
    %169 = vmatprep.subr.mxu0 0.0
    %170 = vmatpush1.xpose.msra.mxu0 0.0
    %171 = vmatprep.subr.mxu0 %v135
    %172 = vmatpush1.xpose.msra.mxu0 %v127
    %173 = vmatprep.subr.mxu0 0.0
    %174 = vmatpush2.xpose.msra.mxu0 0.0
    %175 = vmatprep.subr.mxu0 0.0
    %176 = vmatpush2.xpose.msra.mxu0 0.0
    %177 = vmatprep.subr.mxu0 0.0
    %178 = vmatpush2.xpose.msra.mxu0 0.0
    %179 = vmatprep.subr.mxu0 0.0
    %180 = vmatpush2.xpose.msra.mxu0 0.0
    %181 = vmatprep.subr.mxu0 0.0
    %182 = vmatpush2.xpose.msra.mxu0 0.0
    %183 = vmatprep.subr.mxu0 0.0
    %184 = vmatpush2.xpose.msra.mxu0 0.0
    %185 = vmatprep.subr.mxu0 0.0
    %186 = vmatpush2.xpose.msra.mxu0 0.0
    %187 = vmatprep.subr.mxu0 0.0
    %188 = vmatpush2.xpose.msra.mxu0 0.0
    %189 = vmatprep.subr.mxu0 0.0
    %190 = vmatpush2.xpose.msra.mxu0 0.0
    %191 = vmatprep.subr.mxu0 0.0
    %192 = vmatpush2.xpose.msra.mxu0 0.0
    %193 = vmatprep.subr.mxu0 0.0
    %194 = vmatpush2.xpose.msra.mxu0 0.0
    %195 = vmatprep.subr.mxu0 0.0
    %196 = vmatpush2.xpose.msra.mxu0 0.0
    %197 = vmatprep.subr.mxu0 0.0
    %198 = vmatpush2.xpose.msra.mxu0 0.0
    %199 = vmatprep.subr.mxu0 0.0
    %200 = vmatpush2.xpose.msra.mxu0 0.0
    %201 = vmatprep.subr.mxu0 0.0
    %202 = vmatpush2.xpose.msra.mxu0 0.0
    %203 = vmatprep.subr.mxu0 0.0
    %204 = vmatpush2.xpose.msra.mxu0 0.0
    %205 = vmatprep.mubr.f32.mxu0 %v36
    %206 = vmatmul.mubr.f32.gmra.mxu0 %v35
    %v207 = vpop.f32.mrf.mxu0
    %v208 = vadd.f32 0.0, %v207
    %v209 = vpop.f32.mrf.mxu0
    %210 = vdwg.mxu0
    %211 = vmatprep.subr.mxu0 0.0
    %212 = vmatpush1.xpose.msra.mxu0 0.0
    %213 = vmatprep.subr.mxu0 0.0
    %214 = vmatpush1.xpose.msra.mxu0 0.0
    %215 = vmatprep.subr.mxu0 0.0
    %216 = vmatpush1.xpose.msra.mxu0 0.0
    %217 = vmatprep.subr.mxu0 0.0
    %218 = vmatpush1.xpose.msra.mxu0 0.0
    %219 = vmatprep.subr.mxu0 0.0
    %220 = vmatpush1.xpose.msra.mxu0 0.0
    %221 = vmatprep.subr.mxu0 0.0
    %222 = vmatpush1.xpose.msra.mxu0 0.0
    %223 = vmatprep.subr.mxu0 0.0
    %224 = vmatpush1.xpose.msra.mxu0 0.0
    %225 = vmatprep.subr.mxu0 0.0
    %226 = vmatpush1.xpose.msra.mxu0 0.0
    %227 = vmatprep.subr.mxu0 0.0
    %228 = vmatpush1.xpose.msra.mxu0 0.0
    %229 = vmatprep.subr.mxu0 0.0
    %230 = vmatpush1.xpose.msra.mxu0 0.0
    %231 = vmatprep.subr.mxu0 0.0
    %232 = vmatpush1.xpose.msra.mxu0 0.0
    %233 = vmatprep.subr.mxu0 0.0
    %234 = vmatpush1.xpose.msra.mxu0 0.0
    %235 = vmatprep.subr.mxu0 0.0
    %236 = vmatpush1.xpose.msra.mxu0 0.0
    %237 = vmatprep.subr.mxu0 0.0
    %238 = vmatpush1.xpose.msra.mxu0 0.0
    %239 = vmatprep.subr.mxu0 0.0
    %240 = vmatpush1.xpose.msra.mxu0 0.0
    %241 = vmatprep.subr.mxu0 %v136
    %242 = vmatpush1.xpose.msra.mxu0 %v134
    %243 = vmatprep.subr.mxu0 0.0
    %244 = vmatpush2.xpose.msra.mxu0 0.0
    %245 = vmatprep.subr.mxu0 0.0
    %246 = vmatpush2.xpose.msra.mxu0 0.0
    %247 = vmatprep.subr.mxu0 0.0
    %248 = vmatpush2.xpose.msra.mxu0 0.0
    %249 = vmatprep.subr.mxu0 0.0
    %250 = vmatpush2.xpose.msra.mxu0 0.0
    %251 = vmatprep.subr.mxu0 0.0
    %252 = vmatpush2.xpose.msra.mxu0 0.0
    %253 = vmatprep.subr.mxu0 0.0
    %254 = vmatpush2.xpose.msra.mxu0 0.0
    %255 = vmatprep.subr.mxu0 0.0
    %256 = vmatpush2.xpose.msra.mxu0 0.0
    %257 = vmatprep.subr.mxu0 0.0
    %258 = vmatpush2.xpose.msra.mxu0 0.0
    %259 = vmatprep.subr.mxu0 0.0
    %260 = vmatpush2.xpose.msra.mxu0 0.0
    %261 = vmatprep.subr.mxu0 0.0
    %262 = vmatpush2.xpose.msra.mxu0 0.0
    %263 = vmatprep.subr.mxu0 0.0
    %264 = vmatpush2.xpose.msra.mxu0 0.0
    %265 = vmatprep.subr.mxu0 0.0
    %266 = vmatpush2.xpose.msra.mxu0 0.0
    %267 = vmatprep.subr.mxu0 0.0
    %268 = vmatpush2.xpose.msra.mxu0 0.0
    %269 = vmatprep.subr.mxu0 0.0
    %270 = vmatpush2.xpose.msra.mxu0 0.0
    %271 = vmatprep.subr.mxu0 0.0
    %272 = vmatpush2.xpose.msra.mxu0 0.0
    %273 = vmatprep.subr.mxu0 0.0
    %274 = vmatpush2.xpose.msra.mxu0 0.0
    %275 = vmatprep.mubr.f32.mxu0 %v38
    %276 = vmatmul.mubr.f32.gmra.mxu0 %v37
    %v277 = vpop.f32.mrf.mxu0
    %v278 = vadd.f32 %v208, %v277
    %v279 = vpop.f32.mrf.mxu0
    %280 = vdwg.mxu0
    %vm281 = vcmask 15360
    %282 = vst.msk [vmem:[%s2] sm:$0xff] %vm281, %v278
    // Predicated region
    $region18: #{classifier_forward.1} parent=1 // pred_check
      _
    $region19: #{classifier_forward.1} parent=1 // pred_check_branch
      %284 = sbr.rel (0) target = $region21
    $region20: #{classifier_forward.1} parent=1 // pred_region
      _
    $region21: #{classifier_forward.1} parent=1 // pred_fallthru
      _
    // Predicated region
    $region22: #{classifier_forward.1} parent=1 // pred_check
      _
    $region23: #{classifier_forward.1} parent=1 // pred_check_branch
      %286 = sbr.rel (0) target = $region25
    $region24: #{classifier_forward.1} parent=1 // pred_region
      _
    $region25: #{classifier_forward.1} parent=1 // pred_fallthru
      _
    %287 = vsyncpa [#allocation3], 1
    %288 = vsyncpa [#allocation5], 1

</llo_original>
